<compile_context>
chip_gen: v6e
topology: v6e:2x2x1
jax: 0.10.0
libtpu: 0.0.40
codegen_flags: <defaults>
</compile_context>

<pallas_src>
import jax
import jax.numpy as jnp
from jax import lax
from jax.experimental import pallas as pl
from jax.experimental.pallas import tpu as pltpu

LN_EPS = 1e-5  # torch.nn.LayerNorm default


# --------------------------------------------------------------------------- #
# Kernel bodies
# --------------------------------------------------------------------------- #
def _ln_pos(x_ref, gamma_ref, beta_ref, pos_ref):
    """LayerNorm over the last axis + positional embedding, in f32.

    x_ref: (TB, TL, D); gamma/beta: (1, D); pos: (1, TL, D). Returns (TB, TL, D) f32.
    """
    x = x_ref[...].astype(jnp.float32)
    inv_d = jnp.float32(1.0 / x.shape[-1])
    # centered (two-pass) variance: data is already in registers, the extra
    # subtraction is free in this HBM-bound kernel and matches torch closely.
    mean = jnp.sum(x, axis=-1, keepdims=True) * inv_d
    xc = x - mean
    var = jnp.sum(xc * xc, axis=-1, keepdims=True) * inv_d
    x_hat = xc * lax.rsqrt(var + jnp.float32(LN_EPS))
    gamma = gamma_ref[...].astype(jnp.float32)   # (1, D)  — cast in-kernel (VPU)
    beta = beta_ref[...].astype(jnp.float32)     # (1, D)
    pos = pos_ref[...].astype(jnp.float32)       # (1, TL, D)
    return x_hat * gamma + beta + pos


def _store_ln_rows(x_ref, o_ref, y):
    """Store the LN+pos rows of this token block into the resident output block."""
    tl = x_ref.shape[1]
    j = pl.program_id(1)
    row0 = j * tl
    if tl % 8 == 0:
        row0 = pl.multiple_of(row0, 8)   # sublane-aligned start -> unmasked vst
    o_ref[:, pl.ds(row0, tl), :] = y.astype(o_ref.dtype)


def _projector_kernel_eos(x_ref, gamma_ref, beta_ref, pos_ref, eos_ref, o_ref):
    # o_ref: (TB, L + E, D), resident across the token grid axis.
    tb = x_ref.shape[0]
    e, d = eos_ref.shape[1], eos_ref.shape[2]
    l_total = o_ref.shape[1] - e

    y = _ln_pos(x_ref, gamma_ref, beta_ref, pos_ref)
    # _forward(): identity (abstract in the base Projector)
    _store_ln_rows(x_ref, o_ref, y)

    @pl.when(pl.program_id(1) == pl.num_programs(1) - 1)
    def _():
        # tiny write, once per batch block
        eos = eos_ref[...].astype(o_ref.dtype)               # (1, E, D)
        o_ref[:, l_total:, :] = jnp.broadcast_to(eos, (tb, e, d))


def _projector_kernel_noeos(x_ref, gamma_ref, beta_ref, pos_ref, o_ref):
    y = _ln_pos(x_ref, gamma_ref, beta_ref, pos_ref)
    _store_ln_rows(x_ref, o_ref, y)


# --------------------------------------------------------------------------- #
# Tiling heuristics
# --------------------------------------------------------------------------- #
def _vmem_capacity_bytes():
    try:
        return int(pltpu.get_tpu_info().vmem_capacity_bytes)
    except Exception:
        return 64 * 1024 * 1024  # conservative: v7x per-TensorCore VMEM


def _token_tile_candidates(L):
    """Sublane-aligned token tiles: multiples of 8 that divide L, plus L itself."""
    cands = [d for d in range(8, L, 8) if L % d == 0]
    cands.append(L)
    return sorted(set(cands))


def _pick_tiles(B, L, D, num_eos, x_bytes, pos_bytes, eos_bytes,
                budget_bytes, prefer_two_batch_steps):
    """Pick (TB, TL): batch tile and token tile.

    Accounting (all double-buffered by the Pallas pipeline):
      x block (TB, TL, D), out block (TB, L+E, D, resident across tokens),
      pos (1, TL, D), eos (1, E, D), gamma/beta (1, D) f32.
    """
    out_len = L + num_eos

    def max_tb(tl):
        const = 2 * (tl * D * pos_bytes + num_eos * D * eos_bytes + 2 * D * 4)
        per_b = 2 * D * (tl * x_bytes + out_len * x_bytes)
        tb = (budget_bytes - const) // max(per_b, 1)
        return int(max(1, min(tb, B)))

    tl = L
    tb = max_tb(tl)
    if prefer_two_batch_steps and B >= 2:
        # v7x-class: 2 TensorCores share the chip; keep >= 2 "parallel" steps.
        tb = min(tb, (B + 1) // 2)
    n_b = -(-B // tb)

    # If everything collapsed into a single grid step, split the token axis so
    # the input DMA pipelines against compute (only when L has a sublane-aligned
    # divisor and the chunks stay big enough to amortize per-step overhead).
    if n_b < 2:
        for cand in sorted(_token_tile_candidates(L), reverse=True):
            if cand < L and L // cand >= 2 and cand * D * x_bytes >= (128 << 10):
                tl = cand
                break
    return tb, tl


# --------------------------------------------------------------------------- #
# Wrapper
# --------------------------------------------------------------------------- #
def projector_forward(x, ln_gamma, ln_beta, pos_emb, eos_tokens):
    """x: (B, L, D). Returns (B, L + num_eos, D) (num_eos = 0 if eos_tokens is None).

    TODO(synk): configs with prenorm=False / pos_emb=False are not exercised here.
    """
    B, L, D = x.shape
    gamma2d = ln_gamma.reshape(1, D)   # keep model dtype; cast in-kernel
    beta2d = ln_beta.reshape(1, D)

    num_eos = 0 if eos_tokens is None else eos_tokens.shape[1]
    out_len = L + num_eos

    # generation-aware VMEM budget + explicit scoped limit
    vmem_cap = _vmem_capacity_bytes()
    vmem_limit = min(max(vmem_cap - (16 << 20), 32 << 20), 112 << 20)
    budget = min(int(vmem_limit * 0.75), 64 << 20)
    prefer_two = vmem_cap <= (64 << 20)   # v7x-class part (2 TCs / chip)

    x_bytes = x.dtype.itemsize
    pos_bytes = pos_emb.dtype.itemsize
    eos_bytes = eos_tokens.dtype.itemsize if eos_tokens is not None else 0

    TB, TL = _pick_tiles(B, L, D, num_eos, x_bytes, pos_bytes, eos_bytes,
                         budget, prefer_two)
    nB = -(-B // TB)          # ragged last batch block is masked by Pallas
    nT = L // TL              # TL divides L by construction
    grid = (nB, nT)

    x_spec = pl.BlockSpec((TB, TL, D), lambda i, j: (i, j, 0))
    gb_spec = pl.BlockSpec((1, D), lambda i, j: (0, 0))
    pos_spec = pl.BlockSpec((1, TL, D), lambda i, j: (0, j, 0))
    # output block is resident across the token axis (index_map ignores j)
    out_spec = pl.BlockSpec((TB, out_len, D), lambda i, j: (i, 0, 0))

    if eos_tokens is None:
        kernel = _projector_kernel_noeos
        in_specs = [x_spec, gb_spec, gb_spec, pos_spec]
        args = (x, gamma2d, beta2d, pos_emb)
    else:
        eos_spec = pl.BlockSpec((1, num_eos, D), lambda i, j: (0, 0, 0))
        kernel = _projector_kernel_eos
        in_specs = [x_spec, gb_spec, gb_spec, pos_spec, eos_spec]
        args = (x, gamma2d, beta2d, pos_emb, eos_tokens)

    return pl.pallas_call(
        kernel,
        out_shape=jax.ShapeDtypeStruct((B, out_len, D), x.dtype),
        grid_spec=pltpu.PrefetchScalarGridSpec(
            num_scalar_prefetch=0,
            grid=grid,
            in_specs=in_specs,
            out_specs=out_spec,
        ),
        compiler_params=pltpu.CompilerParams(
            dimension_semantics=("parallel", "arbitrary"),
            vmem_limit_bytes=int(vmem_limit),
        ),
    )(*args)


# --------------------------------------------------------------------------- #
# Demo / self-test
# --------------------------------------------------------------------------- #
def _trunc_normal(key, shape, std):
    # matches nn.init.trunc_normal_(mean=0, std=std, a=-2, b=2) closely enough
    return jax.random.truncated_normal(key, -2.0, 2.0, shape, jnp.float32) * std


if __name__ == "__main__":
    # Config (synthetic, deterministic):
    #   encoder_hidden_size = output_hidden_size = 32 (identity _forward)
    #   num_input_tokens = 8, num_eos_tokens = 2, prenorm = True, pos_emb = True
    B, L, D = 2, 8, 32
    NUM_EOS = 2
    INIT_RANGE = 0.02

    key = jax.random.PRNGKey(0)
    kx, kpos, keos = jax.random.split(key, 3)

    x = jax.random.normal(kx, (B, L, D), jnp.float32)

    # Parameters (deterministic init, mirroring the module's __init__)
    ln_gamma = jnp.ones((D,), jnp.float32)                          # LayerNorm.weight
    ln_beta = jnp.zeros((D,), jnp.float32)                          # LayerNorm.bias
    pos_emb = _trunc_normal(kpos, (1, L, D), 0.02)                  # build_pos_embeds
    eos_tokens = _trunc_normal(keos, (1, NUM_EOS, D), INIT_RANGE)   # build_eos_tokens

    out = projector_forward(x, ln_gamma, ln_beta, pos_emb, eos_tokens)
    out = jax.block_until_ready(out)

    assert out.shape == (B, L + NUM_EOS, D), out.shape

    # reference check (plain JAX)
    mean = jnp.mean(x, axis=-1, keepdims=True)
    var = jnp.mean((x - mean) ** 2, axis=-1, keepdims=True)
    ref = (x - mean) / jnp.sqrt(var + LN_EPS) * ln_gamma + ln_beta + pos_emb
    ref = jnp.concatenate([ref, jnp.broadcast_to(eos_tokens, (B, NUM_EOS, D))], axis=1)
    assert jnp.allclose(out, ref, atol=2e-5, rtol=1e-5), float(jnp.max(jnp.abs(out - ref)))

    print("KERNEL_OK")
</pallas_src>

<mosaic_0001>
module attributes {stable_mosaic.version = 11 : i64} {
  func.func @_projector_kernel_eos(%arg0: i32, %arg1: i32, %arg2: memref<1x8x32xf32, #tpu.memory_space<vmem>>, %arg3: memref<1x32xf32, #tpu.memory_space<vmem>>, %arg4: memref<1x32xf32, #tpu.memory_space<vmem>>, %arg5: memref<1x8x32xf32, #tpu.memory_space<vmem>>, %arg6: memref<1x2x32xf32, #tpu.memory_space<vmem>>, %arg7: memref<1x10x32xf32, #tpu.memory_space<vmem>>) attributes {dimension_semantics = [#tpu.dimension_semantics<parallel>, #tpu.dimension_semantics<arbitrary>], iteration_bounds = array<i64: 2, 1>, scalar_prefetch = 0 : i64, scratch_operands = 0 : i64, tpu.core_type = #tpu.core_type<tc>, window_params = [{transform_indices = @transform_0, window_bounds = array<i64: 1, 8, 32>}, {pipeline_mode = #tpu.pipeline_mode<synchronous>, transform_indices = @transform_1, window_bounds = array<i64: 1, 32>}, {pipeline_mode = #tpu.pipeline_mode<synchronous>, transform_indices = @transform_2, window_bounds = array<i64: 1, 32>}, {transform_indices = @transform_3, window_bounds = array<i64: 1, 8, 32>}, {pipeline_mode = #tpu.pipeline_mode<synchronous>, transform_indices = @transform_4, window_bounds = array<i64: 1, 2, 32>}, {transform_indices = @transform_5, window_bounds = array<i64: 1, 10, 32>}]} {
    %c0 = arith.constant 0 : index
    %c0_0 = arith.constant 0 : index
    %c0_1 = arith.constant 0 : index
    %0 = vector.load %arg2[%c0, %c0_0, %c0_1] : memref<1x8x32xf32, #tpu.memory_space<vmem>>, vector<1x8x32xf32>
    %cst = arith.constant dense<0.000000e+00> : vector<1x8xf32>
    %1 = vector.multi_reduction <add>, %0, %cst [2] : vector<1x8x32xf32> to vector<1x8xf32>
    %2 = vector.shape_cast %1 : vector<1x8xf32> to vector<1x8x1xf32>
    %cst_2 = arith.constant 3.125000e-02 : f32
    %3 = vector.broadcast %cst_2 : f32 to vector<1x8x1xf32>
    %4 = arith.mulf %2, %3 : vector<1x8x1xf32>
    %5 = vector.broadcast %4 : vector<1x8x1xf32> to vector<1x8x32xf32>
    %6 = arith.subf %0, %5 : vector<1x8x32xf32>
    %7 = arith.mulf %6, %6 : vector<1x8x32xf32>
    %cst_3 = arith.constant dense<0.000000e+00> : vector<1x8xf32>
    %8 = vector.multi_reduction <add>, %7, %cst_3 [2] : vector<1x8x32xf32> to vector<1x8xf32>
    %9 = vector.shape_cast %8 : vector<1x8xf32> to vector<1x8x1xf32>
    %cst_4 = arith.constant 3.125000e-02 : f32
    %10 = vector.broadcast %cst_4 : f32 to vector<1x8x1xf32>
    %11 = arith.mulf %9, %10 : vector<1x8x1xf32>
    %cst_5 = arith.constant 9.99999974E-6 : f32
    %12 = vector.broadcast %cst_5 : f32 to vector<1x8x1xf32>
    %13 = arith.addf %11, %12 : vector<1x8x1xf32>
    %14 = math.rsqrt %13 : vector<1x8x1xf32>
    %15 = vector.broadcast %14 : vector<1x8x1xf32> to vector<1x8x32xf32>
    %16 = arith.mulf %6, %15 : vector<1x8x32xf32>
    %c0_6 = arith.constant 0 : index
    %c0_7 = arith.constant 0 : index
    %17 = vector.load %arg3[%c0_6, %c0_7] : memref<1x32xf32, #tpu.memory_space<vmem>>, vector<1x32xf32>
    %c0_8 = arith.constant 0 : index
    %c0_9 = arith.constant 0 : index
    %18 = vector.load %arg4[%c0_8, %c0_9] : memref<1x32xf32, #tpu.memory_space<vmem>>, vector<1x32xf32>
    %c0_10 = arith.constant 0 : index
    %c0_11 = arith.constant 0 : index
    %c0_12 = arith.constant 0 : index
    %19 = vector.load %arg5[%c0_10, %c0_11, %c0_12] : memref<1x8x32xf32, #tpu.memory_space<vmem>>, vector<1x8x32xf32>
    %20 = vector.shape_cast %17 : vector<1x32xf32> to vector<1x1x32xf32>
    %21 = vector.broadcast %20 : vector<1x1x32xf32> to vector<1x8x32xf32>
    %22 = arith.mulf %16, %21 : vector<1x8x32xf32>
    %23 = vector.shape_cast %18 : vector<1x32xf32> to vector<1x1x32xf32>
    %24 = vector.broadcast %23 : vector<1x1x32xf32> to vector<1x8x32xf32>
    %25 = arith.addf %22, %24 : vector<1x8x32xf32>
    %26 = arith.addf %25, %19 : vector<1x8x32xf32>
    %c8_i32 = arith.constant 8 : i32
    %27 = arith.muli %arg1, %c8_i32 : i32
    %28 = tpu.assume_multiple %27, 8 : i32
    %c0_13 = arith.constant 0 : index
    %29 = arith.index_cast %28 : i32 to index
    %c0_14 = arith.constant 0 : index
    %30 = vector.load %arg7[%c0_13, %29, %c0_14] : memref<1x10x32xf32, #tpu.memory_space<vmem>>, vector<1x8x32xf32>
    tpu.vector_store %arg7[%c0_13, %29, %c0_14], %26 {strides = array<i32>} : memref<1x10x32xf32, #tpu.memory_space<vmem>>, vector<1x8x32xf32>,
    %c0_i32 = arith.constant 0 : i32
    %31 = arith.cmpi eq, %arg1, %c0_i32 : i32
    %32 = arith.extui %31 : i1 to i32
    %c0_i32_15 = arith.constant 0 : i32
    %33 = arith.cmpi ne, %32, %c0_i32_15 : i32
    scf.if %33 {
      %c0_16 = arith.constant 0 : index
      %c0_17 = arith.constant 0 : index
      %c0_18 = arith.constant 0 : index
      %34 = vector.load %arg6[%c0_16, %c0_17, %c0_18] : memref<1x2x32xf32, #tpu.memory_space<vmem>>, vector<1x2x32xf32>
      %c0_19 = arith.constant 0 : index
      %c8 = arith.constant 8 : index
      %c0_20 = arith.constant 0 : index
      %35 = vector.load %arg7[%c0_19, %c8, %c0_20] : memref<1x10x32xf32, #tpu.memory_space<vmem>>, vector<1x2x32xf32>
      tpu.vector_store %arg7[%c0_19, %c8, %c0_20], %34 {strides = array<i32>} : memref<1x10x32xf32, #tpu.memory_space<vmem>>, vector<1x2x32xf32>,
    } else {
    }
    return
  }
  func.func @transform_0(%arg0: i32, %arg1: i32) -> (i32, i32, i32) {
    %c0_i32 = arith.constant 0 : i32
    %c0_i32_0 = arith.constant 0 : i32
    return %arg0, %arg1, %c0_i32 : i32, i32, i32
  }
  func.func @transform_1(%arg0: i32, %arg1: i32) -> (i32, i32) {
    %c0_i32 = arith.constant 0 : i32
    %c0_i32_0 = arith.constant 0 : i32
    %c0_i32_1 = arith.constant 0 : i32
    return %c0_i32, %c0_i32_0 : i32, i32
  }
  func.func @transform_2(%arg0: i32, %arg1: i32) -> (i32, i32) {
    %c0_i32 = arith.constant 0 : i32
    %c0_i32_0 = arith.constant 0 : i32
    %c0_i32_1 = arith.constant 0 : i32
    return %c0_i32, %c0_i32_0 : i32, i32
  }
  func.func @transform_3(%arg0: i32, %arg1: i32) -> (i32, i32, i32) {
    %c0_i32 = arith.constant 0 : i32
    %c0_i32_0 = arith.constant 0 : i32
    %c0_i32_1 = arith.constant 0 : i32
    return %c0_i32, %arg1, %c0_i32_0 : i32, i32, i32
  }
  func.func @transform_4(%arg0: i32, %arg1: i32) -> (i32, i32, i32) {
    %c0_i32 = arith.constant 0 : i32
    %c0_i32_0 = arith.constant 0 : i32
    %c0_i32_1 = arith.constant 0 : i32
    %c0_i32_2 = arith.constant 0 : i32
    return %c0_i32, %c0_i32_0, %c0_i32_1 : i32, i32, i32
  }
  func.func @transform_5(%arg0: i32, %arg1: i32) -> (i32, i32, i32) {
    %c0_i32 = arith.constant 0 : i32
    %c0_i32_0 = arith.constant 0 : i32
    %c0_i32_1 = arith.constant 0 : i32
    return %arg0, %c0_i32, %c0_i32_0 : i32, i32, i32
  }
}

</mosaic_0001>

<llo_original>
// kernel: tpu_custom_call.1
$region0: #{tpu_custom_call.1}
  #allocation0 [shape = 'u32[]', space=smem, size = 0x4, offset = 0x4, fixed_abs, tag = 'smem constant byte address 0x4 - core index']
  #allocation1 [shape = 'u32[144,128]{1,0:T(1,128)}', space=vmem, size = 0x12000, scoped, tag = 'internal scratch']
  %s0 = inlined_call_operand.hbm [shape: f32[2,8,32], index: 0, kind: input, shape index: {}]
  %s1 = inlined_call_operand.vmem [shape: f32[1,32], index: 1, kind: input, shape index: {}]
  %s2 = inlined_call_operand.hbm [shape: f32[1,32], index: 2, kind: input, shape index: {}]
  %s3 = inlined_call_operand.hbm [shape: f32[1,8,32], index: 3, kind: input, shape index: {}]
  %s4 = inlined_call_operand.vmem [shape: f32[1,2,32], index: 4, kind: input, shape index: {}]
  %s5 = inlined_call_operand.vmem [shape: f32[2,10,32], index: 5, kind: output, shape index: {}]
  %s6 = sld [smem:[#allocation0]]
  $region69: #{tpu_custom_call.1} parent=0
    _
  %s8 = ssub.s32 1, %s6
  %s9 = scalar_select 0, %s8, %s6
  $region1: #{tpu_custom_call.1} parent=0
    #allocation2 [shape = 'u8[8192]{0}', space=vmem, size = 0x2000, scoped, tag = 'input window, operand 0']
    #allocation3 [shape = 's32[2]{0}', space=sflag, size = 0x8, scoped, tag = 'scoped memory for tpu_custom_call.1']
    #allocation4 [shape = 'u8[512]{0}', space=vmem, size = 0x400, scoped, tag = 'input window, operand 2, single buffered']
    #allocation5 [shape = 's32[1]{0}', space=sflag, size = 0x4, scoped, tag = 'scoped memory for tpu_custom_call.1']
    #allocation6 [shape = 'u8[4096]{0}', space=vmem, size = 0x1000, scoped, tag = 'input window, operand 3, single buffered']
    %10 = vsyncpa [#allocation3], 0
    %s11 = scalar_lea.sflag [#allocation3], 1
    %12 = vsyncpa %s11, 0
    %13 = vsyncpa [#allocation5], 0
    loop: start=0, step=1, limit=4
    $region2: #{tpu_custom_call.1} parent=1 // loop_pre_header
      _
    $region3: #{tpu_custom_call.1} parent=1 // loop_header
      %s15 = sphi 0, %s19
      %p16 = scmp.ge.s32.totalorder %s15, 4
      %s22 = sphi 0, %s34
      %s23 = sphi 0, %s30
      %s24 = sphi 0, %s22
      %s25 = sphi 0, %s23
      %s26 = sphi 0, %s24
      %s27 = sphi 0, %s25
      %s39 = sphi 0, %s41
      %s42 = sphi 0, %s39
      %s43 = sphi 0, %s42
      %s59 = sphi 0, %s43
      %s63 = sphi 0, %s63
      %s65 = sphi 0, %s63
      %s66 = sphi 0, %s65
      %s80 = sphi 0, %s66
      %s84 = sphi 0, %s84
      %s86 = sphi 0, %s84
      %s87 = sphi 0, %s86
      %s101 = sphi 0, %s87
      %s107 = sphi 0, %s109
      %s110 = sphi 0, %s107
      %s111 = sphi 0, %s110
      %s127 = sphi 0, %s111
      %s131 = sphi 0, %s131
      %s133 = sphi 0, %s131
      %s134 = sphi 0, %s133
      %s148 = sphi 0, %s134
      %s154 = sphi 0, %s156
      %s157 = sphi 0, %s154
      %s158 = sphi 0, %s157
      %s174 = sphi 0, %s158
    $region4: #{tpu_custom_call.1} parent=1 // loop_header_branch
      %18 = sbr.rel (%p16) target = $region8
    $region5: #{tpu_custom_call.1} parent=1 // loop_body
      %s20 = ssub.s32 %s15, 1
      %s21 = ssub.s32 %s15, 2
      %s28 = sadd.s32 1, %s23
      %p29 = scmp.ge.s32.totalorder %s28, 1
      %s30 = scalar_select %p29, 0, %s28
      %s31 = sadd.s32 1, %s22
      %s32 = scalar_select %p29, %s31, %s22
      %p33 = scmp.ge.s32.totalorder %s32, 2
      %s34 = scalar_select %p33, 0, %s32
      %s35 = ssub.s32 %s22, %s34
      %s36 = ssub.s32 %s23, %s30
      %s37 = sor.u32 %s35, %s36
      %p38 = scmp.eq.s32.totalorder %s37, 0
      %s40 = sadd.s32 %s39, 1
      %s41 = scalar_select %p38, %s39, %s40
      %p44 = pneg %p38
      %p45 = scmp.eq.s32.totalorder %s15, 1
      %p46 = por %p44, %p45
      %p47 = scmp.ne.s32.totalorder %s39, %s42
      %p48 = scmp.eq.s32.totalorder %s15, 0
      %p49 = por %p47, %p48
      %p50 = scmp.ne.s32.totalorder %s39, %s42
      %p51 = scmp.eq.s32.totalorder %s20, 1
      %p52 = por %p50, %p51
      %p53 = scmp.ne.s32.totalorder %s42, %s43
      %p54 = scmp.eq.s32.totalorder %s20, 0
      %p55 = por %p53, %p54
      %p56 = scmp.ne.s32.totalorder %s42, %s43
      %p57 = scmp.eq.s32.totalorder %s21, 1
      %p58 = por %p56, %p57
      %p60 = scmp.ne.s32.totalorder %s43, %s59
      %p61 = scmp.eq.s32.totalorder %s21, 0
      %p62 = por %p60, %p61
      %s64 = sadd.s32 %s63, 1
      %p67 = scmp.eq.s32.totalorder %s15, 1
      %p68 = scmp.ne.s32.totalorder %s63, %s65
      %p69 = scmp.eq.s32.totalorder %s15, 0
      %p70 = por %p68, %p69
      %p71 = scmp.ne.s32.totalorder %s63, %s65
      %p72 = scmp.eq.s32.totalorder %s20, 1
      %p73 = por %p71, %p72
      %p74 = scmp.ne.s32.totalorder %s65, %s66
      %p75 = scmp.eq.s32.totalorder %s20, 0
      %p76 = por %p74, %p75
      %p77 = scmp.ne.s32.totalorder %s65, %s66
      %p78 = scmp.eq.s32.totalorder %s21, 1
      %p79 = por %p77, %p78
      %p81 = scmp.ne.s32.totalorder %s66, %s80
      %p82 = scmp.eq.s32.totalorder %s21, 0
      %p83 = por %p81, %p82
      %s85 = sadd.s32 %s84, 1
      %p88 = scmp.eq.s32.totalorder %s15, 1
      %p89 = scmp.ne.s32.totalorder %s84, %s86
      %p90 = scmp.eq.s32.totalorder %s15, 0
      %p91 = por %p89, %p90
      %p92 = scmp.ne.s32.totalorder %s84, %s86
      %p93 = scmp.eq.s32.totalorder %s20, 1
      %p94 = por %p92, %p93
      %p95 = scmp.ne.s32.totalorder %s86, %s87
      %p96 = scmp.eq.s32.totalorder %s20, 0
      %p97 = por %p95, %p96
      %p98 = scmp.ne.s32.totalorder %s86, %s87
      %p99 = scmp.eq.s32.totalorder %s21, 1
      %p100 = por %p98, %p99
      %p102 = scmp.ne.s32.totalorder %s87, %s101
      %p103 = scmp.eq.s32.totalorder %s21, 0
      %p104 = por %p102, %p103
      %s105 = ssub.s32 %s23, %s30
      %p106 = scmp.eq.s32.totalorder %s105, 0
      %s108 = sadd.s32 %s107, 1
      %s109 = scalar_select %p106, %s107, %s108
      %p112 = pneg %p106
      %p113 = scmp.eq.s32.totalorder %s15, 1
      %p114 = por %p112, %p113
      %p115 = scmp.ne.s32.totalorder %s107, %s110
      %p116 = scmp.eq.s32.totalorder %s15, 0
      %p117 = por %p115, %p116
      %p118 = scmp.ne.s32.totalorder %s107, %s110
      %p119 = scmp.eq.s32.totalorder %s20, 1
      %p120 = por %p118, %p119
      %p121 = scmp.ne.s32.totalorder %s110, %s111
      %p122 = scmp.eq.s32.totalorder %s20, 0
      %p123 = por %p121, %p122
      %p124 = scmp.ne.s32.totalorder %s110, %s111
      %p125 = scmp.eq.s32.totalorder %s21, 1
      %p126 = por %p124, %p125
      %p128 = scmp.ne.s32.totalorder %s111, %s127
      %p129 = scmp.eq.s32.totalorder %s21, 0
      %p130 = por %p128, %p129
      %s132 = sadd.s32 %s131, 1
      %p135 = scmp.eq.s32.totalorder %s15, 1
      %p136 = scmp.ne.s32.totalorder %s131, %s133
      %p137 = scmp.eq.s32.totalorder %s15, 0
      %p138 = por %p136, %p137
      %p139 = scmp.ne.s32.totalorder %s131, %s133
      %p140 = scmp.eq.s32.totalorder %s20, 1
      %p141 = por %p139, %p140
      %p142 = scmp.ne.s32.totalorder %s133, %s134
      %p143 = scmp.eq.s32.totalorder %s20, 0
      %p144 = por %p142, %p143
      %p145 = scmp.ne.s32.totalorder %s133, %s134
      %p146 = scmp.eq.s32.totalorder %s21, 1
      %p147 = por %p145, %p146
      %p149 = scmp.ne.s32.totalorder %s134, %s148
      %p150 = scmp.eq.s32.totalorder %s21, 0
      %p151 = por %p149, %p150
      %s152 = ssub.s32 %s22, %s34
      %p153 = scmp.eq.s32.totalorder %s152, 0
      %s155 = sadd.s32 %s154, 1
      %s156 = scalar_select %p153, %s154, %s155
      %p159 = pneg %p153
      %p160 = scmp.eq.s32.totalorder %s15, 1
      %p161 = por %p159, %p160
      %p162 = scmp.ne.s32.totalorder %s154, %s157
      %p163 = scmp.eq.s32.totalorder %s15, 0
      %p164 = por %p162, %p163
      %p165 = scmp.ne.s32.totalorder %s154, %s157
      %p166 = scmp.eq.s32.totalorder %s20, 1
      %p167 = por %p165, %p166
      %p168 = scmp.ne.s32.totalorder %s157, %s158
      %p169 = scmp.eq.s32.totalorder %s20, 0
      %p170 = por %p168, %p169
      %p171 = scmp.ne.s32.totalorder %s157, %s158
      %p172 = scmp.eq.s32.totalorder %s21, 1
      %p173 = por %p171, %p172
      %p175 = scmp.ne.s32.totalorder %s158, %s174
      %p176 = scmp.eq.s32.totalorder %s21, 0
      %p177 = por %p175, %p176
      %p178 = scmp.le.s32.totalorder 1, %s15
      %p179 = scmp.lt.s32.totalorder %s15, 3
      %p180 = pnand %p178, %p179
      %p181 = pneg %p180
      // Predicated region
      $region9: #{tpu_custom_call.1} parent=5 // pred_check
        _
      $region10: #{tpu_custom_call.1} parent=5 // pred_check_branch
        %183 = sbr.rel (%p180) target = $region12
      $region11: #{tpu_custom_call.1} parent=5 // pred_region
        %s184 = ssub.s32 %s15, 1
        // Predicated region
        $region13: #{tpu_custom_call.1} parent=11 // pred_check
          %p185 = pneg %p76
        $region14: #{tpu_custom_call.1} parent=11 // pred_check_branch
          %187 = sbr.rel (%p185) target = $region16
        $region15: #{tpu_custom_call.1} parent=11 // pred_region
          _
        $region16: #{tpu_custom_call.1} parent=11 // pred_fallthru
          _
        // Predicated region
        $region17: #{tpu_custom_call.1} parent=11 // pred_check
          %p188 = pneg %p97
        $region18: #{tpu_custom_call.1} parent=11 // pred_check_branch
          %190 = sbr.rel (%p188) target = $region20
        $region19: #{tpu_custom_call.1} parent=11 // pred_region
          %s192 = ssub.s32 16, 16
          %193 = vsyncadd [#allocation5], %s192
          %s195 = sshll.u32 [#allocation4], 4
          %s196 = int_to_ptr.vmem [resolvable:$true] %s195
          %198 = dma.hbm_to_vmem [thread:$0]  %s2, 16, %s196, [#allocation5]
        $region20: #{tpu_custom_call.1} parent=11 // pred_fallthru
          _
        // Predicated region
        $region21: #{tpu_custom_call.1} parent=11 // pred_check
          %p199 = pneg %p123
        $region22: #{tpu_custom_call.1} parent=11 // pred_check_branch
          %201 = sbr.rel (%p199) target = $region24
        $region23: #{tpu_custom_call.1} parent=11 // pred_region
          %s203 = ssub.s32 128, 128
          %204 = vsyncadd [#allocation5], %s203
          %s205 = smul.addr %s25, 128
          %s206 = scalar_lea.hbm %s3, %s205
          %s208 = sshll.u32 [#allocation6], 4
          %s209 = int_to_ptr.vmem [resolvable:$true] %s208
          %211 = dma.hbm_to_vmem [thread:$0]  %s206, 128, %s209, [#allocation5]
        $region24: #{tpu_custom_call.1} parent=11 // pred_fallthru
          _
        // Predicated region
        $region25: #{tpu_custom_call.1} parent=11 // pred_check
          %p212 = pneg %p144
        $region26: #{tpu_custom_call.1} parent=11 // pred_check_branch
          %214 = sbr.rel (%p212) target = $region28
        $region27: #{tpu_custom_call.1} parent=11 // pred_region
          _
        $region28: #{tpu_custom_call.1} parent=11 // pred_fallthru
          _
      $region12: #{tpu_custom_call.1} parent=5 // pred_fallthru
        _
      %p215 = scmp.lt.s32.totalorder %s15, 2
      // Predicated region
      $region29: #{tpu_custom_call.1} parent=5 // pred_check
        %p216 = pneg %p215
      $region30: #{tpu_custom_call.1} parent=5 // pred_check_branch
        %218 = sbr.rel (%p216) target = $region32
      $region31: #{tpu_custom_call.1} parent=5 // pred_region
        // Predicated region
        $region33: #{tpu_custom_call.1} parent=31 // pred_check
          %p219 = pneg %p49
        $region34: #{tpu_custom_call.1} parent=31 // pred_check_branch
          %221 = sbr.rel (%p219) target = $region36
        $region35: #{tpu_custom_call.1} parent=31 // pred_region
          %s222 = sand.u32 %s39, 1
          %s223 = scalar_lea.sflag [#allocation3], %s222
          %s224 = sand.u32 %s39, 1
          %s225 = smul.addr %s224, 8
          %s226 = scalar_lea.vmem [#allocation2], %s225
          %s228 = ssub.s32 128, 128
          %229 = vsyncadd %s223, %s228
          %s230 = sadd.s32 %s23, %s22
          %s231 = smul.addr %s230, 128
          %s232 = scalar_lea.hbm %s0, %s231
          %s234 = sshll.u32 %s226, 4
          %s235 = int_to_ptr.vmem [resolvable:$true] %s234
          %237 = dma.hbm_to_vmem [thread:$0]  %s232, 128, %s235, %s223
        $region36: #{tpu_custom_call.1} parent=31 // pred_fallthru
          _
      $region32: #{tpu_custom_call.1} parent=5 // pred_fallthru
        _
      %p238 = scmp.le.s32.totalorder 1, %s15
      %p239 = scmp.lt.s32.totalorder %s15, 3
      %p240 = pnand %p238, %p239
      %p241 = pneg %p240
      // Predicated region
      $region37: #{tpu_custom_call.1} parent=5 // pred_check
        _
      $region38: #{tpu_custom_call.1} parent=5 // pred_check_branch
        %243 = sbr.rel (%p240) target = $region40
      $region39: #{tpu_custom_call.1} parent=5 // pred_region
        %s244 = ssub.s32 %s15, 1
        %s245 = sand.u32 %s42, 1
        %s246 = scalar_lea.sflag [#allocation3], %s245
        %s247 = sand.u32 %s42, 1
        %s248 = smul.addr %s247, 8
        %s249 = scalar_lea.vmem [#allocation2], %s248
        // Predicated region
        $region41: #{tpu_custom_call.1} parent=39 // pred_check
          %p250 = pneg %p55
        $region42: #{tpu_custom_call.1} parent=39 // pred_check_branch
          %252 = sbr.rel (%p250) target = $region44
        $region43: #{tpu_custom_call.1} parent=39 // pred_region
          %253 = dma.done %s246, 128
        $region44: #{tpu_custom_call.1} parent=39 // pred_fallthru
          _
        // Predicated region
        $region45: #{tpu_custom_call.1} parent=39 // pred_check
          %p254 = pneg %p97
        $region46: #{tpu_custom_call.1} parent=39 // pred_check_branch
          %256 = sbr.rel (%p254) target = $region48
        $region47: #{tpu_custom_call.1} parent=39 // pred_region
          %257 = dma.done [#allocation5], 16
        $region48: #{tpu_custom_call.1} parent=39 // pred_fallthru
          _
        // Predicated region
        $region49: #{tpu_custom_call.1} parent=39 // pred_check
          %p258 = pneg %p123
        $region50: #{tpu_custom_call.1} parent=39 // pred_check_branch
          %260 = sbr.rel (%p258) target = $region52
        $region51: #{tpu_custom_call.1} parent=39 // pred_region
          %261 = dma.done [#allocation5], 128
        $region52: #{tpu_custom_call.1} parent=39 // pred_fallthru
          _
        %s262 = sand.u32 %s42, 1
        %s263 = scalar_lea.sflag [#allocation3], %s262
        %s264 = sand.u32 %s42, 1
        %s265 = smul.addr %s264, 8
        %s266 = scalar_lea.vmem [#allocation2], %s265
        %p267 = pneg %p55
        %p268 = pneg %p52
        %p269 = pneg %p76
        %p270 = pneg %p73
        %p271 = pneg %p97
        %p272 = pneg %p94
        %p273 = pneg %p123
        %p274 = pneg %p120
        %p275 = pneg %p144
        %p276 = pneg %p141
        %p277 = pneg %p170
        %p278 = pneg %p167
        %p279 = scmp.lt.s32.totalorder %s24, 1
        %s280 = scalar_select %p279, %s24, 1
        %s281 = smul.addr %s280, 2
        %s282 = smul.addr %s281, 8
        %s283 = scalar_lea.vmem %s5, %s282
        %p284 = scmp.lt.s32.totalorder %s24, 1
        %s285 = scalar_select %p284, %s24, 1
        %s286 = smul.addr %s285, 2
        %s287 = smul.addr %s286, 8
        %s288 = scalar_lea.vmem %s5, %s287
        %v289 = vld [vmem:[%s249] sm:$0xff]
        %vm290 = vcmask 261120
        %v291 = vsel %vm290, %v289, 0.0
        %292 = vadd.xlane.f32.xlu0 %v291
        %v293 = vpop.xlane.xlu0 %292
        %v294 = vmul.f32 %v293, 0.03125
        %v295 = vsub.f32 %v289, %v294
        %v296 = vmul.f32 %v295, %v295
        %v297 = vsel %vm290, %v296, 0.0
        %298 = vadd.xlane.f32.xlu0 %v297
        %v299 = vpop.xlane.xlu0 %298
        %v300 = vmul.f32 %v299, 0.03125
        %v301 = vadd.f32 %v300, 1e-05
        %v302 = vrsqrt.pop %v301
        %v303 = vmul.f32 %v295, %v302
        %v304 = vld [vmem:[%s1] sm:$0x1]
        %v305 = vld [vmem:[#allocation4] sm:$0x1]
        %v306 = vld [vmem:[#allocation6] sm:$0xff]
        %v308 = vlaneseq
        %v309 = vshrl.u32 %v308, 7
        %v310 = vsub.s32 0, %v309
        %v311 = vrot.slane %v304, %v310
        %v313 = vmul.f32 %v303, %v311
        %v315 = vlaneseq
        %v316 = vshrl.u32 %v315, 7
        %v317 = vsub.s32 0, %v316
        %v318 = vrot.slane %v305, %v317
        %v320 = vadd.f32 %v313, %v318
        %v321 = vadd.f32 %v320, %v306
        %s322 = smul.u32 %s25, 8
        %s323 = scalar_lea.vmem %s288, %s322
        %324 = vst.msk [vmem:[%s323] sm:$0xff] %vm290, %v321
        %p325 = scmp.eq.s32.totalorder %s25, 0
        // Predicated region
        $region53: #{tpu_custom_call.1} parent=39 // pred_check
          %p326 = pneg %p325
        $region54: #{tpu_custom_call.1} parent=39 // pred_check_branch
          %328 = sbr.rel (%p326) target = $region56
        $region55: #{tpu_custom_call.1} parent=39 // pred_region
          %v329 = vld [vmem:[%s4] sm:$0x3]
          %vm330 = vcmask 254976
          %331 = vst.msk [vmem:[%s288 + $0x8] sm:$0x3] %vm330, %v329
        $region56: #{tpu_custom_call.1} parent=39 // pred_fallthru
          _
        %p332 = scmp.lt.s32.totalorder %s24, 1
        %s333 = scalar_select %p332, %s24, 1
        %s334 = smul.addr %s333, 2
        %s335 = smul.addr %s334, 8
        %s336 = scalar_lea.vmem %s5, %s335
        // Predicated region
        $region57: #{tpu_custom_call.1} parent=39 // pred_check
          %p337 = pneg %p167
        $region58: #{tpu_custom_call.1} parent=39 // pred_check_branch
          %339 = sbr.rel (%p337) target = $region60
        $region59: #{tpu_custom_call.1} parent=39 // pred_region
          _
        $region60: #{tpu_custom_call.1} parent=39 // pred_fallthru
          _
      $region40: #{tpu_custom_call.1} parent=5 // pred_fallthru
        _
      %p340 = scmp.le.s32.totalorder 2, %s15
      // Predicated region
      $region61: #{tpu_custom_call.1} parent=5 // pred_check
        %p341 = pneg %p340
      $region62: #{tpu_custom_call.1} parent=5 // pred_check_branch
        %343 = sbr.rel (%p341) target = $region64
      $region63: #{tpu_custom_call.1} parent=5 // pred_region
        %s344 = ssub.s32 %s15, 2
        // Predicated region
        $region65: #{tpu_custom_call.1} parent=63 // pred_check
          %p345 = pneg %p173
        $region66: #{tpu_custom_call.1} parent=63 // pred_check_branch
          %347 = sbr.rel (%p345) target = $region68
        $region67: #{tpu_custom_call.1} parent=63 // pred_region
          %p348 = scmp.lt.s32.totalorder %s26, 1
          %s349 = scalar_select %p348, %s26, 1
          %s350 = smul.addr %s349, 2
          %s351 = smul.addr %s350, 8
          %s352 = scalar_lea.vmem %s5, %s351
        $region68: #{tpu_custom_call.1} parent=63 // pred_fallthru
          _
      $region64: #{tpu_custom_call.1} parent=5 // pred_fallthru
        _
    $region6: #{tpu_custom_call.1} parent=1 // loop_footer
      %s19 = sadd.s32 1, %s15
    $region7: #{tpu_custom_call.1} parent=1 // loop_footer_branch
      %14 = sbr.rel target = $region3
    $region8: #{tpu_custom_call.1} parent=1 // loop_exit
      _
    %353 = vsyncpa [#allocation3], 1
    %s354 = scalar_lea.sflag [#allocation3], 1
    %355 = vsyncpa %s354, 1
    %356 = vsyncpa [#allocation5], 1

</llo_original>
